<compile_context>
chip_gen: v7x
topology: tpu7x:2x2x1
jax: 0.10.0
libtpu: 0.0.40
codegen_flags: <defaults>
</compile_context>

<pallas_src>
import functools

import jax
import jax.numpy as jnp
from jax.experimental import pallas as pl
from jax.experimental.pallas import tpu as pltpu

# ---------------- module configuration (matches FDQNorm2.__init__) ------------
LEVELS = [8, 8, 8, 5, 5, 5]            # lqt_8 / lqt_5, 3 channels each
DIM = len(LEVELS)                      # 6; project_in/out are Identity
LOW, UP = -1.0, 1.0
LTQ_EPS = 1e-3                         # LTQSoft.eps
NORM_EPS = 1e-12                       # F.normalize eps
N_VAL_8, N_VAL_5 = 7, 4
MAX_THRESH = 7
N_THRESH = (N_VAL_8,) * 3 + (N_VAL_5,) * 3   # (7,7,7,4,4,4)
LANE = 128
MAX_BLOCK_ROWS = 2048                  # hard cap -> <=14 MiB/step, v7x-safe


# ---------------- deterministic parameter / threshold setup (host-side) -------
def _ltq_setup(num_splits, channels=3, up=UP, low=LOW):
    """Reproduce LTQSoft.__init__ defaults and its threshold construction."""
    n_val = num_splits - 1
    interval = (up - low) / n_val
    a = jnp.full((channels, n_val), interval, jnp.float32)
    start = jnp.full((channels,), low, jnp.float32)
    scale1 = jnp.ones((channels,), jnp.float32)
    scale2 = jnp.ones((channels,), jnp.float32)
    bias = jnp.zeros((channels,), jnp.float32)

    a_pos = jnp.where(a > LTQ_EPS, a, LTQ_EPS)
    a_pos = jax.nn.softmax(a_pos, axis=1) * (up - low)   # F.softmax implicit dim=1
    thres = []
    for i in range(n_val):
        if i == 0:
            t = start + a_pos[:, 0] / 2.0
        else:
            t = thres[-1] + a_pos[:, i - 1] / 2.0 + a_pos[:, i] / 2.0
        thres.append(t)
    thresh = jnp.stack(thres, axis=1)                    # (channels, n_val)
    return dict(interval=interval, scale1=scale1, scale2=scale2,
                bias=bias, thresh=thresh)


def _uniformly_spaced(t):
    """True iff each row of t is (numerically) an arithmetic progression."""
    n = t.shape[1]
    if n < 2:
        return True
    d = (t[:, -1] - t[:, 0]) / (n - 1)
    fit = t[:, :1] + d[:, None] * jnp.arange(n, dtype=jnp.float32)[None, :]
    return bool(jnp.max(jnp.abs(t - fit)) < 1e-6)


def build_params():
    p8 = _ltq_setup(8)
    p5 = _ltq_setup(5)

    scale1 = jnp.concatenate([p8["scale1"], p5["scale1"]])
    scale2 = jnp.concatenate([p8["scale2"], p5["scale2"]])
    bias = jnp.concatenate([p8["bias"], p5["bias"]])
    interval = jnp.array([p8["interval"]] * 3 + [p5["interval"]] * 3, jnp.float32)

    # Folding x*scale1 > t into x > t/scale1 requires scale1 > 0 (true at init).
    # TODO(synk): re-validate this fold (and the uniformity check) when loading
    # learned checkpoint parameters instead of the deterministic init.
    assert float(jnp.min(scale1)) > 0.0, "scale1 must be > 0 to fold into thresholds"

    # (6, 7) folded threshold table (compare path); unused slots never fire.
    thresh = jnp.full((DIM, MAX_THRESH), 1e30, jnp.float32)
    thresh = thresh.at[:3, :N_VAL_8].set(p8["thresh"] / p8["scale1"][:, None])
    thresh = thresh.at[3:, :N_VAL_5].set(p5["thresh"] / p5["scale1"][:, None])

    # Arithmetic fast path: with equally spaced thresholds t_i = t0 + i*delta,
    #   #{i : x*scale1 > t_i} = clamp(ceil(x*scale1/delta - t0/delta), 0, n_val)
    uniform = _uniformly_spaced(p8["thresh"]) and _uniformly_spaced(p5["thresh"])
    d8 = (p8["thresh"][:, -1] - p8["thresh"][:, 0]) / (N_VAL_8 - 1)
    d5 = (p5["thresh"][:, -1] - p5["thresh"][:, 0]) / (N_VAL_5 - 1)
    delta = jnp.concatenate([d8, d5])
    t0 = jnp.concatenate([p8["thresh"][:, 0], p5["thresh"][:, 0]])
    slope = scale1 / delta
    c0 = -t0 / delta

    # code = (LOW + cnt*interval)*scale2 + bias  ==  cnt*A + B
    A = interval * scale2
    B = LOW * scale2 + bias
    basis = jnp.cumprod(jnp.array([1] + LEVELS[:-1], jnp.float32))  # [1,8,64,512,2560,12800]

    par = jnp.stack([slope, c0, A, B, basis], axis=1).astype(jnp.float32)  # (6, 5)
    return thresh, par, uniform


# ---------------- Pallas kernel (the hot path) ---------------------------------
def fdq_kernel(thresh_ref, par_ref, z_ref, codes_ref, idx_ref, *, uniform, chunk):
    # thresh_ref: (6,7) f32 SMEM; par_ref: (6,5) f32 SMEM (scalar prefetch).
    # z_ref / codes_ref: (bt, 6, ts, 128) VMEM; idx_ref: (bt, ts, 128) i32 VMEM.
    bt = z_ref.shape[0]
    ts = z_ref.shape[2]
    n_chunks = ts // chunk

    # Hoist every SMEM scalar read once; reused by every chunk and both sweeps.
    slope = [par_ref[c, 0] for c in range(DIM)]
    c0 = [par_ref[c, 1] for c in range(DIM)]
    A = [par_ref[c, 2] for c in range(DIM)]
    B = [par_ref[c, 3] for c in range(DIM)]
    basis = [par_ref[c, 4] for c in range(DIM)]
    th = None
    if not uniform:
        th = [[thresh_ref[c, i] for i in range(N_THRESH[c])] for c in range(DIM)]

    def count(x, c):
        if uniform:
            # ~5 VPU ops instead of 3*n_val compare/convert/add ops.
            u = x * slope[c] + c0[c]
            return jnp.clip(jnp.ceil(u), 0.0, float(N_THRESH[c]))
        cnt = (x > th[c][0]).astype(jnp.float32)
        for i in range(1, N_THRESH[c]):            # static, fully unrolled
            cnt = cnt + (x > th[c][i]).astype(jnp.float32)
        return cnt

    # TODO(synk): optional bf16 staircase (v6e/v7x only) on top of the
    # arithmetic path; skipped to keep one kernel correct on all generations.

    # Process the tile in small row chunks so the full z->codes->out chain for a
    # chunk stays in registers (no spill of 6 full-tile `codes` arrays).
    @pl.loop(0, bt)
    def _(bi):
        @pl.loop(0, n_chunks)
        def _(ci):
            rows = pl.ds(pl.multiple_of(ci * chunk, chunk), chunk)

            # ---- first L2 normalize over channels (rsqrt -> EUP slot) ----
            zs = [z_ref[bi, c, rows, :] for c in range(DIM)]
            ss = zs[0] * zs[0]
            for c in range(1, DIM):
                ss = ss + zs[c] * zs[c]
            inv = jax.lax.rsqrt(jnp.maximum(ss, NORM_EPS * NORM_EPS))

            # ---- staircase + folded affine; second sum-of-squares ----
            codes = []
            ss2 = None
            for c in range(DIM):
                code = count(zs[c] * inv, c) * A[c] + B[c]
                codes.append(code)
                sq = code * code
                ss2 = sq if ss2 is None else ss2 + sq
            inv2 = jax.lax.rsqrt(jnp.maximum(ss2, NORM_EPS * NORM_EPS))

            # ---- second normalize, write codes, accumulate codebook index ----
            idx = None
            for c in range(DIM):
                out = codes[c] * inv2
                codes_ref[bi, c, rows, :] = out.astype(codes_ref.dtype)
                contrib = count(out, c) * basis[c]
                idx = contrib if idx is None else idx + contrib
            idx_ref[bi, rows, :] = idx.astype(jnp.int32)   # exact: max 63999 < 2^24


# ---------------- tiling choice ------------------------------------------------
def _round_up(x, m):
    return ((x + m - 1) // m) * m


def _choose_tiling(b, n_rows, target_rows):
    """Pick (batch tile, row tile, padded row count).

    Row tile is always a multiple of 8 (legal under the (8,128) rule); rows are
    zero-padded up to a multiple of the tile.  Batch tiling amortizes the
    ~0.35us per-grid-step overhead for small spatial extents, and the grid is
    kept at >=2 steps when possible so v7x's two TensorCores both get work."""
    target = max(8, min(_round_up(int(target_rows), 8), MAX_BLOCK_ROWS))
    ts = min(_round_up(n_rows, 8), target)

    bt = 1
    for d in range(1, b + 1):
        if b % d == 0 and d * ts <= target:
            bt = d

    n_rows_p = _round_up(n_rows, ts)

    if (b // bt) * (n_rows_p // ts) == 1:          # single-step grid: split it
        if bt > 1:
            for d in range(bt - 1, 0, -1):
                if b % d == 0:
                    bt = d
                    break
        elif ts % 16 == 0 and n_rows > 8:
            ts //= 2
            n_rows_p = _round_up(n_rows, ts)
    return bt, ts, n_rows_p


# ---------------- wrapper -------------------------------------------------------
@functools.partial(jax.jit, static_argnames=("uniform", "block_rows", "out_dtype"))
def fdq_norm2_forward(z_nchw, thresh, par, *, uniform=True, block_rows=512,
                      out_dtype=jnp.float32):
    b, c, h, w = z_nchw.shape
    assert c == DIM
    hw = h * w
    n_rows = pl.cdiv(hw, LANE)
    bt, ts, n_rows_p = _choose_tiling(b, n_rows, block_rows)
    chunk = 16 if ts % 16 == 0 else 8
    hw_p = n_rows_p * LANE

    # Free, transpose-less views: NCHW -> (b, 6, rows, 128); zero-pad tail rows.
    z3 = z_nchw.reshape(b, DIM, hw).astype(jnp.float32)
    if hw_p != hw:
        z3 = jnp.pad(z3, ((0, 0), (0, 0), (0, hw_p - hw)))
    z4 = z3.reshape(b, DIM, n_rows_p, LANE)

    # Explicit VMEM budget from the chosen tile (safe on v7x's 64 MiB VMEM).
    out_bytes = jnp.dtype(out_dtype).itemsize
    step_bytes = bt * ts * LANE * (DIM * 4 + DIM * out_bytes + 4)
    vmem_limit = int(min(max(3 * step_bytes + (2 << 20), 16 << 20), 48 << 20))

    kernel = functools.partial(fdq_kernel, uniform=uniform, chunk=chunk)

    codes, idx = pl.pallas_call(
        kernel,
        out_shape=(jax.ShapeDtypeStruct((b, DIM, n_rows_p, LANE), out_dtype),
                   jax.ShapeDtypeStruct((b, n_rows_p, LANE), jnp.int32)),
        grid_spec=pltpu.PrefetchScalarGridSpec(
            num_scalar_prefetch=2,                 # thresh, par -> SMEM
            grid=(b // bt, n_rows_p // ts),
            in_specs=[
                pl.BlockSpec((bt, DIM, ts, LANE),
                             lambda bi, ri, *_: (bi, 0, ri, 0)),
            ],
            out_specs=[
                pl.BlockSpec((bt, DIM, ts, LANE),
                             lambda bi, ri, *_: (bi, 0, ri, 0)),
                pl.BlockSpec((bt, ts, LANE),
                             lambda bi, ri, *_: (bi, ri, 0)),
            ],
        ),
        compiler_params=pltpu.CompilerParams(
            dimension_semantics=("parallel", "parallel"),
            vmem_limit_bytes=vmem_limit),
    )(thresh, par, z4)
    # TODO(synk): if an xprof trace on v5e still shows exposed DMA, add
    # pipeline_mode=pl.Buffered(3) to the input spec (skip on v6e/v7x).

    codes = codes.reshape(b, DIM, hw_p)
    idx = idx.reshape(b, hw_p)
    if hw_p != hw:
        codes = codes[:, :, :hw]
        idx = idx[:, :hw]
    out = codes.reshape(b, DIM, h, w)              # free reshape back to NCHW
    indices = idx.reshape(b, h, w)
    return out, indices


# ---------------- pure-JAX reference (faithful threshold compares) --------------
def reference(z_nchw, thresh, par):
    b, c, h, w = z_nchw.shape
    z = jnp.transpose(z_nchw, (0, 2, 3, 1)).reshape(b * h * w, c)
    A, B, basis = par[:, 2], par[:, 3], par[:, 4]

    def normalize(x):
        ss = jnp.sum(x * x, -1, keepdims=True)
        return x * jax.lax.rsqrt(jnp.maximum(ss, NORM_EPS * NORM_EPS))

    def count(x):
        return jnp.sum((x[:, :, None] > thresh[None, :, :]), axis=-1).astype(jnp.float32)

    zn = normalize(z)
    code = count(zn) * A + B
    out = normalize(code)
    idx = jnp.sum(count(out) * basis, axis=-1).astype(jnp.int32)
    out = jnp.transpose(out.reshape(b, h, w, c), (0, 3, 1, 2))
    return out, idx.reshape(b, h, w)


def _check(out, indices, ref_out, ref_idx):
    assert out.shape == ref_out.shape
    assert indices.shape == ref_idx.shape and indices.dtype == jnp.int32
    # Tolerance checks (per review): fp rounding can flip the bin of an element
    # that lies exactly on a staircase threshold; allow a vanishing count.
    diff = jnp.abs(out.astype(jnp.float32) - ref_out)
    flipped = diff > 1e-4
    n_flip = int(jnp.sum(flipped))
    assert n_flip <= max(2, out.size // 1000), f"codes mismatch ({n_flip} elems)"
    assert float(jnp.max(jnp.where(flipped, 0.0, diff))) <= 1e-5, "codes drift"
    n_idx = int(jnp.sum(indices != ref_idx))
    assert n_idx <= max(2, indices.size // 1000), f"indices mismatch ({n_idx} elems)"


if __name__ == "__main__":
    key = jax.random.PRNGKey(0)
    b, c, h, w = 2, DIM, 16, 16                    # NCHW, dim = len(levels) = 6
    z = jax.random.normal(key, (b, c, h, w), jnp.float32)

    thresh, par, uniform = build_params()
    ref_out, ref_idx = reference(z, thresh, par)

    # Fast arithmetic-staircase path (default init thresholds are uniform).
    out, indices = fdq_norm2_forward(z, thresh, par, uniform=uniform)
    jax.block_until_ready((out, indices))
    _check(out, indices, ref_out, ref_idx)

    # Threshold-table fallback path (for learned, non-uniform thresholds).
    out_t, idx_t = fdq_norm2_forward(z, thresh, par, uniform=False)
    jax.block_until_ready((out_t, idx_t))
    _check(out_t, idx_t, ref_out, ref_idx)

    # TODO(synk): backward/STE path (x_fwd.detach()+x_bwd-x_bwd.detach()) has no
    # forward-value effect and is not represented (inference-only kernel).
    print("KERNEL_OK")
</pallas_src>

<mosaic_0001>
module attributes {stable_mosaic.version = 11 : i64} {
  func.func @fdq_kernel(%arg0: i32, %arg1: i32, %arg2: memref<6x7xf32, #tpu.memory_space<smem>>, %arg3: memref<6x5xf32, #tpu.memory_space<smem>>, %arg4: memref<1x6x8x128xf32, #tpu.memory_space<vmem>>, %arg5: memref<1x6x8x128xf32, #tpu.memory_space<vmem>>, %arg6: memref<1x8x128xi32, #tpu.memory_space<vmem>>) attributes {dimension_semantics = [#tpu.dimension_semantics<parallel>, #tpu.dimension_semantics<parallel>], iteration_bounds = array<i64: 2, 1>, scalar_prefetch = 2 : i64, scratch_operands = 0 : i64, tpu.core_type = #tpu.core_type<tc>, window_params = [{transform_indices = @transform_0, window_bounds = array<i64: 1, 6, 8, 128>}, {transform_indices = @transform_1, window_bounds = array<i64: 1, 6, 8, 128>}, {transform_indices = @transform_2, window_bounds = array<i64: 1, 8, 128>}]} {
    %c0 = arith.constant 0 : index
    %c0_0 = arith.constant 0 : index
    %0 = memref.load %arg3[%c0, %c0_0] : memref<6x5xf32, #tpu.memory_space<smem>>
    %c1 = arith.constant 1 : index
    %c0_1 = arith.constant 0 : index
    %1 = memref.load %arg3[%c1, %c0_1] : memref<6x5xf32, #tpu.memory_space<smem>>
    %c2 = arith.constant 2 : index
    %c0_2 = arith.constant 0 : index
    %2 = memref.load %arg3[%c2, %c0_2] : memref<6x5xf32, #tpu.memory_space<smem>>
    %c3 = arith.constant 3 : index
    %c0_3 = arith.constant 0 : index
    %3 = memref.load %arg3[%c3, %c0_3] : memref<6x5xf32, #tpu.memory_space<smem>>
    %c4 = arith.constant 4 : index
    %c0_4 = arith.constant 0 : index
    %4 = memref.load %arg3[%c4, %c0_4] : memref<6x5xf32, #tpu.memory_space<smem>>
    %c5 = arith.constant 5 : index
    %c0_5 = arith.constant 0 : index
    %5 = memref.load %arg3[%c5, %c0_5] : memref<6x5xf32, #tpu.memory_space<smem>>
    %c0_6 = arith.constant 0 : index
    %c1_7 = arith.constant 1 : index
    %6 = memref.load %arg3[%c0_6, %c1_7] : memref<6x5xf32, #tpu.memory_space<smem>>
    %c1_8 = arith.constant 1 : index
    %c1_9 = arith.constant 1 : index
    %7 = memref.load %arg3[%c1_8, %c1_9] : memref<6x5xf32, #tpu.memory_space<smem>>
    %c2_10 = arith.constant 2 : index
    %c1_11 = arith.constant 1 : index
    %8 = memref.load %arg3[%c2_10, %c1_11] : memref<6x5xf32, #tpu.memory_space<smem>>
    %c3_12 = arith.constant 3 : index
    %c1_13 = arith.constant 1 : index
    %9 = memref.load %arg3[%c3_12, %c1_13] : memref<6x5xf32, #tpu.memory_space<smem>>
    %c4_14 = arith.constant 4 : index
    %c1_15 = arith.constant 1 : index
    %10 = memref.load %arg3[%c4_14, %c1_15] : memref<6x5xf32, #tpu.memory_space<smem>>
    %c5_16 = arith.constant 5 : index
    %c1_17 = arith.constant 1 : index
    %11 = memref.load %arg3[%c5_16, %c1_17] : memref<6x5xf32, #tpu.memory_space<smem>>
    %c0_18 = arith.constant 0 : index
    %c2_19 = arith.constant 2 : index
    %12 = memref.load %arg3[%c0_18, %c2_19] : memref<6x5xf32, #tpu.memory_space<smem>>
    %c1_20 = arith.constant 1 : index
    %c2_21 = arith.constant 2 : index
    %13 = memref.load %arg3[%c1_20, %c2_21] : memref<6x5xf32, #tpu.memory_space<smem>>
    %c2_22 = arith.constant 2 : index
    %c2_23 = arith.constant 2 : index
    %14 = memref.load %arg3[%c2_22, %c2_23] : memref<6x5xf32, #tpu.memory_space<smem>>
    %c3_24 = arith.constant 3 : index
    %c2_25 = arith.constant 2 : index
    %15 = memref.load %arg3[%c3_24, %c2_25] : memref<6x5xf32, #tpu.memory_space<smem>>
    %c4_26 = arith.constant 4 : index
    %c2_27 = arith.constant 2 : index
    %16 = memref.load %arg3[%c4_26, %c2_27] : memref<6x5xf32, #tpu.memory_space<smem>>
    %c5_28 = arith.constant 5 : index
    %c2_29 = arith.constant 2 : index
    %17 = memref.load %arg3[%c5_28, %c2_29] : memref<6x5xf32, #tpu.memory_space<smem>>
    %c0_30 = arith.constant 0 : index
    %c3_31 = arith.constant 3 : index
    %18 = memref.load %arg3[%c0_30, %c3_31] : memref<6x5xf32, #tpu.memory_space<smem>>
    %c1_32 = arith.constant 1 : index
    %c3_33 = arith.constant 3 : index
    %19 = memref.load %arg3[%c1_32, %c3_33] : memref<6x5xf32, #tpu.memory_space<smem>>
    %c2_34 = arith.constant 2 : index
    %c3_35 = arith.constant 3 : index
    %20 = memref.load %arg3[%c2_34, %c3_35] : memref<6x5xf32, #tpu.memory_space<smem>>
    %c3_36 = arith.constant 3 : index
    %c3_37 = arith.constant 3 : index
    %21 = memref.load %arg3[%c3_36, %c3_37] : memref<6x5xf32, #tpu.memory_space<smem>>
    %c4_38 = arith.constant 4 : index
    %c3_39 = arith.constant 3 : index
    %22 = memref.load %arg3[%c4_38, %c3_39] : memref<6x5xf32, #tpu.memory_space<smem>>
    %c5_40 = arith.constant 5 : index
    %c3_41 = arith.constant 3 : index
    %23 = memref.load %arg3[%c5_40, %c3_41] : memref<6x5xf32, #tpu.memory_space<smem>>
    %c0_42 = arith.constant 0 : index
    %c4_43 = arith.constant 4 : index
    %24 = memref.load %arg3[%c0_42, %c4_43] : memref<6x5xf32, #tpu.memory_space<smem>>
    %c1_44 = arith.constant 1 : index
    %c4_45 = arith.constant 4 : index
    %25 = memref.load %arg3[%c1_44, %c4_45] : memref<6x5xf32, #tpu.memory_space<smem>>
    %c2_46 = arith.constant 2 : index
    %c4_47 = arith.constant 4 : index
    %26 = memref.load %arg3[%c2_46, %c4_47] : memref<6x5xf32, #tpu.memory_space<smem>>
    %c3_48 = arith.constant 3 : index
    %c4_49 = arith.constant 4 : index
    %27 = memref.load %arg3[%c3_48, %c4_49] : memref<6x5xf32, #tpu.memory_space<smem>>
    %c4_50 = arith.constant 4 : index
    %c4_51 = arith.constant 4 : index
    %28 = memref.load %arg3[%c4_50, %c4_51] : memref<6x5xf32, #tpu.memory_space<smem>>
    %c5_52 = arith.constant 5 : index
    %c4_53 = arith.constant 4 : index
    %29 = memref.load %arg3[%c5_52, %c4_53] : memref<6x5xf32, #tpu.memory_space<smem>>
    %c0_i32 = arith.constant 0 : i32
    %c1_i32 = arith.constant 1 : i32
    %30 = arith.muli %c0_i32, %c1_i32 : i32
    %c0_i32_54 = arith.constant 0 : i32
    %31 = arith.addi %c0_i32_54, %30 : i32
    %c0_i32_55 = arith.constant 0 : i32
    %c1_i32_56 = arith.constant 1 : i32
    %32 = arith.muli %c0_i32_55, %c1_i32_56 : i32
    %c0_i32_57 = arith.constant 0 : i32
    %33 = arith.addi %c0_i32_57, %32 : i32
    %c8_i32 = arith.constant 8 : i32
    %34 = arith.muli %33, %c8_i32 : i32
    %35 = tpu.assume_multiple %34, 8 : i32
    %36 = arith.index_cast %31 : i32 to index
    %c0_58 = arith.constant 0 : index
    %37 = arith.index_cast %35 : i32 to index
    %c0_59 = arith.constant 0 : index
    %38 = vector.load %arg4[%36, %c0_58, %37, %c0_59] : memref<1x6x8x128xf32, #tpu.memory_space<vmem>>, vector<1x1x8x128xf32>
    %39 = vector.shape_cast %38 : vector<1x1x8x128xf32> to vector<8x128xf32>
    %40 = arith.index_cast %31 : i32 to index
    %c1_60 = arith.constant 1 : index
    %41 = arith.index_cast %35 : i32 to index
    %c0_61 = arith.constant 0 : index
    %42 = vector.load %arg4[%40, %c1_60, %41, %c0_61] : memref<1x6x8x128xf32, #tpu.memory_space<vmem>>, vector<1x1x8x128xf32>
    %43 = vector.shape_cast %42 : vector<1x1x8x128xf32> to vector<8x128xf32>
    %44 = arith.index_cast %31 : i32 to index
    %c2_62 = arith.constant 2 : index
    %45 = arith.index_cast %35 : i32 to index
    %c0_63 = arith.constant 0 : index
    %46 = vector.load %arg4[%44, %c2_62, %45, %c0_63] : memref<1x6x8x128xf32, #tpu.memory_space<vmem>>, vector<1x1x8x128xf32>
    %47 = vector.shape_cast %46 : vector<1x1x8x128xf32> to vector<8x128xf32>
    %48 = arith.index_cast %31 : i32 to index
    %c3_64 = arith.constant 3 : index
    %49 = arith.index_cast %35 : i32 to index
    %c0_65 = arith.constant 0 : index
    %50 = vector.load %arg4[%48, %c3_64, %49, %c0_65] : memref<1x6x8x128xf32, #tpu.memory_space<vmem>>, vector<1x1x8x128xf32>
    %51 = vector.shape_cast %50 : vector<1x1x8x128xf32> to vector<8x128xf32>
    %52 = arith.index_cast %31 : i32 to index
    %c4_66 = arith.constant 4 : index
    %53 = arith.index_cast %35 : i32 to index
    %c0_67 = arith.constant 0 : index
    %54 = vector.load %arg4[%52, %c4_66, %53, %c0_67] : memref<1x6x8x128xf32, #tpu.memory_space<vmem>>, vector<1x1x8x128xf32>
    %55 = vector.shape_cast %54 : vector<1x1x8x128xf32> to vector<8x128xf32>
    %56 = arith.index_cast %31 : i32 to index
    %c5_68 = arith.constant 5 : index
    %57 = arith.index_cast %35 : i32 to index
    %c0_69 = arith.constant 0 : index
    %58 = vector.load %arg4[%56, %c5_68, %57, %c0_69] : memref<1x6x8x128xf32, #tpu.memory_space<vmem>>, vector<1x1x8x128xf32>
    %59 = vector.shape_cast %58 : vector<1x1x8x128xf32> to vector<8x128xf32>
    %60 = arith.mulf %39, %39 : vector<8x128xf32>
    %61 = arith.mulf %43, %43 : vector<8x128xf32>
    %62 = arith.addf %60, %61 : vector<8x128xf32>
    %63 = arith.mulf %47, %47 : vector<8x128xf32>
    %64 = arith.addf %62, %63 : vector<8x128xf32>
    %65 = arith.mulf %51, %51 : vector<8x128xf32>
    %66 = arith.addf %64, %65 : vector<8x128xf32>
    %67 = arith.mulf %55, %55 : vector<8x128xf32>
    %68 = arith.addf %66, %67 : vector<8x128xf32>
    %69 = arith.mulf %59, %59 : vector<8x128xf32>
    %70 = arith.addf %68, %69 : vector<8x128xf32>
    %cst = arith.constant 1.000000e-24 : f32
    %71 = vector.broadcast %cst : f32 to vector<8x128xf32>
    %72 = arith.maximumf %70, %71 : vector<8x128xf32>
    %73 = math.rsqrt %72 : vector<8x128xf32>
    %74 = arith.mulf %39, %73 : vector<8x128xf32>
    %75 = vector.broadcast %0 : f32 to vector<8x128xf32>
    %76 = arith.mulf %74, %75 : vector<8x128xf32>
    %77 = vector.broadcast %6 : f32 to vector<8x128xf32>
    %78 = arith.addf %76, %77 : vector<8x128xf32>
    %79 = math.ceil %78 : vector<8x128xf32>
    %cst_70 = arith.constant 0.000000e+00 : f32
    %cst_71 = arith.constant 7.000000e+00 : f32
    %80 = vector.broadcast %cst_70 : f32 to vector<8x128xf32>
    %81 = arith.maximumf %80, %79 : vector<8x128xf32>
    %82 = vector.broadcast %cst_71 : f32 to vector<8x128xf32>
    %83 = arith.minimumf %82, %81 : vector<8x128xf32>
    %84 = vector.broadcast %12 : f32 to vector<8x128xf32>
    %85 = arith.mulf %83, %84 : vector<8x128xf32>
    %86 = vector.broadcast %18 : f32 to vector<8x128xf32>
    %87 = arith.addf %85, %86 : vector<8x128xf32>
    %88 = arith.mulf %87, %87 : vector<8x128xf32>
    %89 = arith.mulf %43, %73 : vector<8x128xf32>
    %90 = vector.broadcast %1 : f32 to vector<8x128xf32>
    %91 = arith.mulf %89, %90 : vector<8x128xf32>
    %92 = vector.broadcast %7 : f32 to vector<8x128xf32>
    %93 = arith.addf %91, %92 : vector<8x128xf32>
    %94 = math.ceil %93 : vector<8x128xf32>
    %cst_72 = arith.constant 0.000000e+00 : f32
    %cst_73 = arith.constant 7.000000e+00 : f32
    %95 = vector.broadcast %cst_72 : f32 to vector<8x128xf32>
    %96 = arith.maximumf %95, %94 : vector<8x128xf32>
    %97 = vector.broadcast %cst_73 : f32 to vector<8x128xf32>
    %98 = arith.minimumf %97, %96 : vector<8x128xf32>
    %99 = vector.broadcast %13 : f32 to vector<8x128xf32>
    %100 = arith.mulf %98, %99 : vector<8x128xf32>
    %101 = vector.broadcast %19 : f32 to vector<8x128xf32>
    %102 = arith.addf %100, %101 : vector<8x128xf32>
    %103 = arith.mulf %102, %102 : vector<8x128xf32>
    %104 = arith.addf %88, %103 : vector<8x128xf32>
    %105 = arith.mulf %47, %73 : vector<8x128xf32>
    %106 = vector.broadcast %2 : f32 to vector<8x128xf32>
    %107 = arith.mulf %105, %106 : vector<8x128xf32>
    %108 = vector.broadcast %8 : f32 to vector<8x128xf32>
    %109 = arith.addf %107, %108 : vector<8x128xf32>
    %110 = math.ceil %109 : vector<8x128xf32>
    %cst_74 = arith.constant 0.000000e+00 : f32
    %cst_75 = arith.constant 7.000000e+00 : f32
    %111 = vector.broadcast %cst_74 : f32 to vector<8x128xf32>
    %112 = arith.maximumf %111, %110 : vector<8x128xf32>
    %113 = vector.broadcast %cst_75 : f32 to vector<8x128xf32>
    %114 = arith.minimumf %113, %112 : vector<8x128xf32>
    %115 = vector.broadcast %14 : f32 to vector<8x128xf32>
    %116 = arith.mulf %114, %115 : vector<8x128xf32>
    %117 = vector.broadcast %20 : f32 to vector<8x128xf32>
    %118 = arith.addf %116, %117 : vector<8x128xf32>
    %119 = arith.mulf %118, %118 : vector<8x128xf32>
    %120 = arith.addf %104, %119 : vector<8x128xf32>
    %121 = arith.mulf %51, %73 : vector<8x128xf32>
    %122 = vector.broadcast %3 : f32 to vector<8x128xf32>
    %123 = arith.mulf %121, %122 : vector<8x128xf32>
    %124 = vector.broadcast %9 : f32 to vector<8x128xf32>
    %125 = arith.addf %123, %124 : vector<8x128xf32>
    %126 = math.ceil %125 : vector<8x128xf32>
    %cst_76 = arith.constant 0.000000e+00 : f32
    %cst_77 = arith.constant 4.000000e+00 : f32
    %127 = vector.broadcast %cst_76 : f32 to vector<8x128xf32>
    %128 = arith.maximumf %127, %126 : vector<8x128xf32>
    %129 = vector.broadcast %cst_77 : f32 to vector<8x128xf32>
    %130 = arith.minimumf %129, %128 : vector<8x128xf32>
    %131 = vector.broadcast %15 : f32 to vector<8x128xf32>
    %132 = arith.mulf %130, %131 : vector<8x128xf32>
    %133 = vector.broadcast %21 : f32 to vector<8x128xf32>
    %134 = arith.addf %132, %133 : vector<8x128xf32>
    %135 = arith.mulf %134, %134 : vector<8x128xf32>
    %136 = arith.addf %120, %135 : vector<8x128xf32>
    %137 = arith.mulf %55, %73 : vector<8x128xf32>
    %138 = vector.broadcast %4 : f32 to vector<8x128xf32>
    %139 = arith.mulf %137, %138 : vector<8x128xf32>
    %140 = vector.broadcast %10 : f32 to vector<8x128xf32>
    %141 = arith.addf %139, %140 : vector<8x128xf32>
    %142 = math.ceil %141 : vector<8x128xf32>
    %cst_78 = arith.constant 0.000000e+00 : f32
    %cst_79 = arith.constant 4.000000e+00 : f32
    %143 = vector.broadcast %cst_78 : f32 to vector<8x128xf32>
    %144 = arith.maximumf %143, %142 : vector<8x128xf32>
    %145 = vector.broadcast %cst_79 : f32 to vector<8x128xf32>
    %146 = arith.minimumf %145, %144 : vector<8x128xf32>
    %147 = vector.broadcast %16 : f32 to vector<8x128xf32>
    %148 = arith.mulf %146, %147 : vector<8x128xf32>
    %149 = vector.broadcast %22 : f32 to vector<8x128xf32>
    %150 = arith.addf %148, %149 : vector<8x128xf32>
    %151 = arith.mulf %150, %150 : vector<8x128xf32>
    %152 = arith.addf %136, %151 : vector<8x128xf32>
    %153 = arith.mulf %59, %73 : vector<8x128xf32>
    %154 = vector.broadcast %5 : f32 to vector<8x128xf32>
    %155 = arith.mulf %153, %154 : vector<8x128xf32>
    %156 = vector.broadcast %11 : f32 to vector<8x128xf32>
    %157 = arith.addf %155, %156 : vector<8x128xf32>
    %158 = math.ceil %157 : vector<8x128xf32>
    %cst_80 = arith.constant 0.000000e+00 : f32
    %cst_81 = arith.constant 4.000000e+00 : f32
    %159 = vector.broadcast %cst_80 : f32 to vector<8x128xf32>
    %160 = arith.maximumf %159, %158 : vector<8x128xf32>
    %161 = vector.broadcast %cst_81 : f32 to vector<8x128xf32>
    %162 = arith.minimumf %161, %160 : vector<8x128xf32>
    %163 = vector.broadcast %17 : f32 to vector<8x128xf32>
    %164 = arith.mulf %162, %163 : vector<8x128xf32>
    %165 = vector.broadcast %23 : f32 to vector<8x128xf32>
    %166 = arith.addf %164, %165 : vector<8x128xf32>
    %167 = arith.mulf %166, %166 : vector<8x128xf32>
    %168 = arith.addf %152, %167 : vector<8x128xf32>
    %cst_82 = arith.constant 1.000000e-24 : f32
    %169 = vector.broadcast %cst_82 : f32 to vector<8x128xf32>
    %170 = arith.maximumf %168, %169 : vector<8x128xf32>
    %171 = math.rsqrt %170 : vector<8x128xf32>
    %172 = arith.mulf %87, %171 : vector<8x128xf32>
    %173 = arith.index_cast %31 : i32 to index
    %c0_83 = arith.constant 0 : index
    %174 = arith.index_cast %35 : i32 to index
    %c0_84 = arith.constant 0 : index
    %175 = vector.load %arg5[%173, %c0_83, %174, %c0_84] : memref<1x6x8x128xf32, #tpu.memory_space<vmem>>, vector<1x1x8x128xf32>
    %176 = vector.shape_cast %175 : vector<1x1x8x128xf32> to vector<8x128xf32>
    %177 = vector.shape_cast %172 : vector<8x128xf32> to vector<1x1x8x128xf32>
    tpu.vector_store %arg5[%173, %c0_83, %174, %c0_84], %177 {strides = array<i32>} : memref<1x6x8x128xf32, #tpu.memory_space<vmem>>, vector<1x1x8x128xf32>,
    %178 = vector.broadcast %0 : f32 to vector<8x128xf32>
    %179 = arith.mulf %172, %178 : vector<8x128xf32>
    %180 = vector.broadcast %6 : f32 to vector<8x128xf32>
    %181 = arith.addf %179, %180 : vector<8x128xf32>
    %182 = math.ceil %181 : vector<8x128xf32>
    %cst_85 = arith.constant 0.000000e+00 : f32
    %cst_86 = arith.constant 7.000000e+00 : f32
    %183 = vector.broadcast %cst_85 : f32 to vector<8x128xf32>
    %184 = arith.maximumf %183, %182 : vector<8x128xf32>
    %185 = vector.broadcast %cst_86 : f32 to vector<8x128xf32>
    %186 = arith.minimumf %185, %184 : vector<8x128xf32>
    %187 = vector.broadcast %24 : f32 to vector<8x128xf32>
    %188 = arith.mulf %186, %187 : vector<8x128xf32>
    %189 = arith.mulf %102, %171 : vector<8x128xf32>
    %190 = arith.index_cast %31 : i32 to index
    %c1_87 = arith.constant 1 : index
    %191 = arith.index_cast %35 : i32 to index
    %c0_88 = arith.constant 0 : index
    %192 = vector.load %arg5[%190, %c1_87, %191, %c0_88] : memref<1x6x8x128xf32, #tpu.memory_space<vmem>>, vector<1x1x8x128xf32>
    %193 = vector.shape_cast %192 : vector<1x1x8x128xf32> to vector<8x128xf32>
    %194 = vector.shape_cast %189 : vector<8x128xf32> to vector<1x1x8x128xf32>
    tpu.vector_store %arg5[%190, %c1_87, %191, %c0_88], %194 {strides = array<i32>} : memref<1x6x8x128xf32, #tpu.memory_space<vmem>>, vector<1x1x8x128xf32>,
    %195 = vector.broadcast %1 : f32 to vector<8x128xf32>
    %196 = arith.mulf %189, %195 : vector<8x128xf32>
    %197 = vector.broadcast %7 : f32 to vector<8x128xf32>
    %198 = arith.addf %196, %197 : vector<8x128xf32>
    %199 = math.ceil %198 : vector<8x128xf32>
    %cst_89 = arith.constant 0.000000e+00 : f32
    %cst_90 = arith.constant 7.000000e+00 : f32
    %200 = vector.broadcast %cst_89 : f32 to vector<8x128xf32>
    %201 = arith.maximumf %200, %199 : vector<8x128xf32>
    %202 = vector.broadcast %cst_90 : f32 to vector<8x128xf32>
    %203 = arith.minimumf %202, %201 : vector<8x128xf32>
    %204 = vector.broadcast %25 : f32 to vector<8x128xf32>
    %205 = arith.mulf %203, %204 : vector<8x128xf32>
    %206 = arith.addf %188, %205 : vector<8x128xf32>
    %207 = arith.mulf %118, %171 : vector<8x128xf32>
    %208 = arith.index_cast %31 : i32 to index
    %c2_91 = arith.constant 2 : index
    %209 = arith.index_cast %35 : i32 to index
    %c0_92 = arith.constant 0 : index
    %210 = vector.load %arg5[%208, %c2_91, %209, %c0_92] : memref<1x6x8x128xf32, #tpu.memory_space<vmem>>, vector<1x1x8x128xf32>
    %211 = vector.shape_cast %210 : vector<1x1x8x128xf32> to vector<8x128xf32>
    %212 = vector.shape_cast %207 : vector<8x128xf32> to vector<1x1x8x128xf32>
    tpu.vector_store %arg5[%208, %c2_91, %209, %c0_92], %212 {strides = array<i32>} : memref<1x6x8x128xf32, #tpu.memory_space<vmem>>, vector<1x1x8x128xf32>,
    %213 = vector.broadcast %2 : f32 to vector<8x128xf32>
    %214 = arith.mulf %207, %213 : vector<8x128xf32>
    %215 = vector.broadcast %8 : f32 to vector<8x128xf32>
    %216 = arith.addf %214, %215 : vector<8x128xf32>
    %217 = math.ceil %216 : vector<8x128xf32>
    %cst_93 = arith.constant 0.000000e+00 : f32
    %cst_94 = arith.constant 7.000000e+00 : f32
    %218 = vector.broadcast %cst_93 : f32 to vector<8x128xf32>
    %219 = arith.maximumf %218, %217 : vector<8x128xf32>
    %220 = vector.broadcast %cst_94 : f32 to vector<8x128xf32>
    %221 = arith.minimumf %220, %219 : vector<8x128xf32>
    %222 = vector.broadcast %26 : f32 to vector<8x128xf32>
    %223 = arith.mulf %221, %222 : vector<8x128xf32>
    %224 = arith.addf %206, %223 : vector<8x128xf32>
    %225 = arith.mulf %134, %171 : vector<8x128xf32>
    %226 = arith.index_cast %31 : i32 to index
    %c3_95 = arith.constant 3 : index
    %227 = arith.index_cast %35 : i32 to index
    %c0_96 = arith.constant 0 : index
    %228 = vector.load %arg5[%226, %c3_95, %227, %c0_96] : memref<1x6x8x128xf32, #tpu.memory_space<vmem>>, vector<1x1x8x128xf32>
    %229 = vector.shape_cast %228 : vector<1x1x8x128xf32> to vector<8x128xf32>
    %230 = vector.shape_cast %225 : vector<8x128xf32> to vector<1x1x8x128xf32>
    tpu.vector_store %arg5[%226, %c3_95, %227, %c0_96], %230 {strides = array<i32>} : memref<1x6x8x128xf32, #tpu.memory_space<vmem>>, vector<1x1x8x128xf32>,
    %231 = vector.broadcast %3 : f32 to vector<8x128xf32>
    %232 = arith.mulf %225, %231 : vector<8x128xf32>
    %233 = vector.broadcast %9 : f32 to vector<8x128xf32>
    %234 = arith.addf %232, %233 : vector<8x128xf32>
    %235 = math.ceil %234 : vector<8x128xf32>
    %cst_97 = arith.constant 0.000000e+00 : f32
    %cst_98 = arith.constant 4.000000e+00 : f32
    %236 = vector.broadcast %cst_97 : f32 to vector<8x128xf32>
    %237 = arith.maximumf %236, %235 : vector<8x128xf32>
    %238 = vector.broadcast %cst_98 : f32 to vector<8x128xf32>
    %239 = arith.minimumf %238, %237 : vector<8x128xf32>
    %240 = vector.broadcast %27 : f32 to vector<8x128xf32>
    %241 = arith.mulf %239, %240 : vector<8x128xf32>
    %242 = arith.addf %224, %241 : vector<8x128xf32>
    %243 = arith.mulf %150, %171 : vector<8x128xf32>
    %244 = arith.index_cast %31 : i32 to index
    %c4_99 = arith.constant 4 : index
    %245 = arith.index_cast %35 : i32 to index
    %c0_100 = arith.constant 0 : index
    %246 = vector.load %arg5[%244, %c4_99, %245, %c0_100] : memref<1x6x8x128xf32, #tpu.memory_space<vmem>>, vector<1x1x8x128xf32>
    %247 = vector.shape_cast %246 : vector<1x1x8x128xf32> to vector<8x128xf32>
    %248 = vector.shape_cast %243 : vector<8x128xf32> to vector<1x1x8x128xf32>
    tpu.vector_store %arg5[%244, %c4_99, %245, %c0_100], %248 {strides = array<i32>} : memref<1x6x8x128xf32, #tpu.memory_space<vmem>>, vector<1x1x8x128xf32>,
    %249 = vector.broadcast %4 : f32 to vector<8x128xf32>
    %250 = arith.mulf %243, %249 : vector<8x128xf32>
    %251 = vector.broadcast %10 : f32 to vector<8x128xf32>
    %252 = arith.addf %250, %251 : vector<8x128xf32>
    %253 = math.ceil %252 : vector<8x128xf32>
    %cst_101 = arith.constant 0.000000e+00 : f32
    %cst_102 = arith.constant 4.000000e+00 : f32
    %254 = vector.broadcast %cst_101 : f32 to vector<8x128xf32>
    %255 = arith.maximumf %254, %253 : vector<8x128xf32>
    %256 = vector.broadcast %cst_102 : f32 to vector<8x128xf32>
    %257 = arith.minimumf %256, %255 : vector<8x128xf32>
    %258 = vector.broadcast %28 : f32 to vector<8x128xf32>
    %259 = arith.mulf %257, %258 : vector<8x128xf32>
    %260 = arith.addf %242, %259 : vector<8x128xf32>
    %261 = arith.mulf %166, %171 : vector<8x128xf32>
    %262 = arith.index_cast %31 : i32 to index
    %c5_103 = arith.constant 5 : index
    %263 = arith.index_cast %35 : i32 to index
    %c0_104 = arith.constant 0 : index
    %264 = vector.load %arg5[%262, %c5_103, %263, %c0_104] : memref<1x6x8x128xf32, #tpu.memory_space<vmem>>, vector<1x1x8x128xf32>
    %265 = vector.shape_cast %264 : vector<1x1x8x128xf32> to vector<8x128xf32>
    %266 = vector.shape_cast %261 : vector<8x128xf32> to vector<1x1x8x128xf32>
    tpu.vector_store %arg5[%262, %c5_103, %263, %c0_104], %266 {strides = array<i32>} : memref<1x6x8x128xf32, #tpu.memory_space<vmem>>, vector<1x1x8x128xf32>,
    %267 = vector.broadcast %5 : f32 to vector<8x128xf32>
    %268 = arith.mulf %261, %267 : vector<8x128xf32>
    %269 = vector.broadcast %11 : f32 to vector<8x128xf32>
    %270 = arith.addf %268, %269 : vector<8x128xf32>
    %271 = math.ceil %270 : vector<8x128xf32>
    %cst_105 = arith.constant 0.000000e+00 : f32
    %cst_106 = arith.constant 4.000000e+00 : f32
    %272 = vector.broadcast %cst_105 : f32 to vector<8x128xf32>
    %273 = arith.maximumf %272, %271 : vector<8x128xf32>
    %274 = vector.broadcast %cst_106 : f32 to vector<8x128xf32>
    %275 = arith.minimumf %274, %273 : vector<8x128xf32>
    %276 = vector.broadcast %29 : f32 to vector<8x128xf32>
    %277 = arith.mulf %275, %276 : vector<8x128xf32>
    %278 = arith.addf %260, %277 : vector<8x128xf32>
    %279 = arith.fptosi %278 : vector<8x128xf32> to vector<8x128xi32>
    %280 = arith.index_cast %31 : i32 to index
    %281 = arith.index_cast %35 : i32 to index
    %c0_107 = arith.constant 0 : index
    %282 = vector.load %arg6[%280, %281, %c0_107] : memref<1x8x128xi32, #tpu.memory_space<vmem>>, vector<1x8x128xi32>
    %283 = vector.shape_cast %282 : vector<1x8x128xi32> to vector<8x128xi32>
    %284 = vector.shape_cast %279 : vector<8x128xi32> to vector<1x8x128xi32>
    tpu.vector_store %arg6[%280, %281, %c0_107], %284 {strides = array<i32>} : memref<1x8x128xi32, #tpu.memory_space<vmem>>, vector<1x8x128xi32>,
    %c1_i32_108 = arith.constant 1 : i32
    %c1_i32_109 = arith.constant 1 : i32
    return
  }
  func.func @transform_0(%arg0: i32, %arg1: i32, %arg2: memref<6x7xf32, #tpu.memory_space<smem>>, %arg3: memref<6x5xf32, #tpu.memory_space<smem>>) -> (i32, i32, i32, i32) {
    %c0_i32 = arith.constant 0 : i32
    %c0_i32_0 = arith.constant 0 : i32
    %c0_i32_1 = arith.constant 0 : i32
    return %arg0, %c0_i32, %arg1, %c0_i32_0 : i32, i32, i32, i32
  }
  func.func @transform_1(%arg0: i32, %arg1: i32, %arg2: memref<6x7xf32, #tpu.memory_space<smem>>, %arg3: memref<6x5xf32, #tpu.memory_space<smem>>) -> (i32, i32, i32, i32) {
    %c0_i32 = arith.constant 0 : i32
    %c0_i32_0 = arith.constant 0 : i32
    %c0_i32_1 = arith.constant 0 : i32
    return %arg0, %c0_i32, %arg1, %c0_i32_0 : i32, i32, i32, i32
  }
  func.func @transform_2(%arg0: i32, %arg1: i32, %arg2: memref<6x7xf32, #tpu.memory_space<smem>>, %arg3: memref<6x5xf32, #tpu.memory_space<smem>>) -> (i32, i32, i32) {
    %c0_i32 = arith.constant 0 : i32
    %c0_i32_0 = arith.constant 0 : i32
    return %arg0, %arg1, %c0_i32 : i32, i32, i32
  }
}

</mosaic_0001>

<llo_original>
// kernel: fdq_norm2_forward.1
$region0: #{fdq_norm2_forward.1}
  #allocation0 [shape = 'u32[]', space=smem, size = 0x4, offset = 0x4, fixed_abs, tag = 'smem constant byte address 0x4 - core index']
  #allocation1 [shape = 'u32[144,128]{1,0:T(1,128)}', space=vmem, size = 0x12000, scoped, tag = 'internal scratch']
  #allocation2 [shape = 's32[1]{0}', space=sflag, size = 0x4, scoped, tag = 'scoped memory for fdq_norm2_forward.1']
  #allocation3 [shape = 'u8[4096]{0}', space=smem, size = 0x1000, scoped, tag = 'prefetched SMEM operand 0']
  #allocation4 [shape = 'u8[4096]{0}', space=smem, size = 0x1000, scoped, tag = 'prefetched SMEM operand 1']
  %s0 = inlined_call_operand.vmem [shape: f32[6,7], index: 0, kind: input, shape index: {}]
  %s1 = inlined_call_operand.vmem [shape: f32[6,5], index: 1, kind: input, shape index: {}]
  %s2 = inlined_call_operand.vmem [shape: f32[2,6,8,128], index: 2, kind: input, shape index: {}]
  %s3 = inlined_call_operand.vmem [shape: f32[2,6,8,128], index: 3, kind: output, shape index: {0}]
  %s4 = inlined_call_operand.vmem [shape: s32[2,8,128], index: 4, kind: output, shape index: {1}]
  %5 = xla_tuple %s3, %s4
  %s6 = sld [smem:[#allocation0]]
  $region45: #{fdq_norm2_forward.1} parent=0
    _
  %s8 = ssub.s32 1, %s6
  %s9 = scalar_select 0, %s8, %s6
  %s10 = sshll.u32 %s0, 4
  %s11 = int_to_ptr.vmem [resolvable:$true] %s10
  %13 = dma.vmem_to_smem %s11, 128, [#allocation3], [#allocation2]
  %s14 = sshll.u32 %s1, 4
  %s15 = int_to_ptr.vmem [resolvable:$true] %s14
  %17 = dma.vmem_to_smem %s15, 128, [#allocation4], [#allocation2]
  %18 = dma.done [#allocation2], 256
  %19 = sfence
  loop: start=0, step=1, limit=4
  $region2: #{fdq_norm2_forward.1} parent=0 // loop_pre_header
    _
  $region3: #{fdq_norm2_forward.1} parent=0 // loop_header
    %s21 = sphi 0, %s25
    %p22 = scmp.ge.s32.totalorder %s21, 4
    %s28 = sphi 0, %s40
    %s29 = sphi 0, %s36
    %s30 = sphi 0, %s28
    %s31 = sphi 0, %s29
    %s32 = sphi 0, %s30
    %s33 = sphi 0, %s31
    %s45 = sphi 0, %s47
    %s48 = sphi 0, %s45
    %s49 = sphi 0, %s48
    %s65 = sphi 0, %s49
    %s73 = sphi 0, %s75
    %s76 = sphi 0, %s73
    %s77 = sphi 0, %s76
    %s93 = sphi 0, %s77
    %s101 = sphi 0, %s103
    %s104 = sphi 0, %s101
    %s105 = sphi 0, %s104
    %s121 = sphi 0, %s105
  $region4: #{fdq_norm2_forward.1} parent=0 // loop_header_branch
    %24 = sbr.rel (%p22) target = $region8
  $region5: #{fdq_norm2_forward.1} parent=0 // loop_body
    %s26 = ssub.s32 %s21, 1
    %s27 = ssub.s32 %s21, 2
    %s34 = sadd.s32 1, %s29
    %p35 = scmp.ge.s32.totalorder %s34, 1
    %s36 = scalar_select %p35, 0, %s34
    %s37 = sadd.s32 1, %s28
    %s38 = scalar_select %p35, %s37, %s28
    %p39 = scmp.ge.s32.totalorder %s38, 2
    %s40 = scalar_select %p39, 0, %s38
    %s41 = ssub.s32 %s28, %s40
    %s42 = ssub.s32 %s29, %s36
    %s43 = sor.u32 %s41, %s42
    %p44 = scmp.eq.s32.totalorder %s43, 0
    %s46 = sadd.s32 %s45, 1
    %s47 = scalar_select %p44, %s45, %s46
    %p50 = pneg %p44
    %p51 = scmp.eq.s32.totalorder %s21, 1
    %p52 = por %p50, %p51
    %p53 = scmp.ne.s32.totalorder %s45, %s48
    %p54 = scmp.eq.s32.totalorder %s21, 0
    %p55 = por %p53, %p54
    %p56 = scmp.ne.s32.totalorder %s45, %s48
    %p57 = scmp.eq.s32.totalorder %s26, 1
    %p58 = por %p56, %p57
    %p59 = scmp.ne.s32.totalorder %s48, %s49
    %p60 = scmp.eq.s32.totalorder %s26, 0
    %p61 = por %p59, %p60
    %p62 = scmp.ne.s32.totalorder %s48, %s49
    %p63 = scmp.eq.s32.totalorder %s27, 1
    %p64 = por %p62, %p63
    %p66 = scmp.ne.s32.totalorder %s49, %s65
    %p67 = scmp.eq.s32.totalorder %s27, 0
    %p68 = por %p66, %p67
    %s69 = ssub.s32 %s28, %s40
    %s70 = ssub.s32 %s29, %s36
    %s71 = sor.u32 %s69, %s70
    %p72 = scmp.eq.s32.totalorder %s71, 0
    %s74 = sadd.s32 %s73, 1
    %s75 = scalar_select %p72, %s73, %s74
    %p78 = pneg %p72
    %p79 = scmp.eq.s32.totalorder %s21, 1
    %p80 = por %p78, %p79
    %p81 = scmp.ne.s32.totalorder %s73, %s76
    %p82 = scmp.eq.s32.totalorder %s21, 0
    %p83 = por %p81, %p82
    %p84 = scmp.ne.s32.totalorder %s73, %s76
    %p85 = scmp.eq.s32.totalorder %s26, 1
    %p86 = por %p84, %p85
    %p87 = scmp.ne.s32.totalorder %s76, %s77
    %p88 = scmp.eq.s32.totalorder %s26, 0
    %p89 = por %p87, %p88
    %p90 = scmp.ne.s32.totalorder %s76, %s77
    %p91 = scmp.eq.s32.totalorder %s27, 1
    %p92 = por %p90, %p91
    %p94 = scmp.ne.s32.totalorder %s77, %s93
    %p95 = scmp.eq.s32.totalorder %s27, 0
    %p96 = por %p94, %p95
    %s97 = ssub.s32 %s28, %s40
    %s98 = ssub.s32 %s29, %s36
    %s99 = sor.u32 %s97, %s98
    %p100 = scmp.eq.s32.totalorder %s99, 0
    %s102 = sadd.s32 %s101, 1
    %s103 = scalar_select %p100, %s101, %s102
    %p106 = pneg %p100
    %p107 = scmp.eq.s32.totalorder %s21, 1
    %p108 = por %p106, %p107
    %p109 = scmp.ne.s32.totalorder %s101, %s104
    %p110 = scmp.eq.s32.totalorder %s21, 0
    %p111 = por %p109, %p110
    %p112 = scmp.ne.s32.totalorder %s101, %s104
    %p113 = scmp.eq.s32.totalorder %s26, 1
    %p114 = por %p112, %p113
    %p115 = scmp.ne.s32.totalorder %s104, %s105
    %p116 = scmp.eq.s32.totalorder %s26, 0
    %p117 = por %p115, %p116
    %p118 = scmp.ne.s32.totalorder %s104, %s105
    %p119 = scmp.eq.s32.totalorder %s27, 1
    %p120 = por %p118, %p119
    %p122 = scmp.ne.s32.totalorder %s105, %s121
    %p123 = scmp.eq.s32.totalorder %s27, 0
    %p124 = por %p122, %p123
    %p125 = scmp.le.s32.totalorder 1, %s21
    %p126 = scmp.lt.s32.totalorder %s21, 3
    %p127 = pnand %p125, %p126
    %p128 = pneg %p127
    // Predicated region
    $region9: #{fdq_norm2_forward.1} parent=5 // pred_check
      _
    $region10: #{fdq_norm2_forward.1} parent=5 // pred_check_branch
      %130 = sbr.rel (%p127) target = $region12
    $region11: #{fdq_norm2_forward.1} parent=5 // pred_region
      %s131 = ssub.s32 %s21, 1
    $region12: #{fdq_norm2_forward.1} parent=5 // pred_fallthru
      _
    %p132 = scmp.lt.s32.totalorder %s21, 2
    // Predicated region
    $region13: #{fdq_norm2_forward.1} parent=5 // pred_check
      %p133 = pneg %p132
    $region14: #{fdq_norm2_forward.1} parent=5 // pred_check_branch
      %135 = sbr.rel (%p133) target = $region16
    $region15: #{fdq_norm2_forward.1} parent=5 // pred_region
      // Predicated region
      $region17: #{fdq_norm2_forward.1} parent=15 // pred_check
        %p136 = pneg %p55
      $region18: #{fdq_norm2_forward.1} parent=15 // pred_check_branch
        %138 = sbr.rel (%p136) target = $region20
      $region19: #{fdq_norm2_forward.1} parent=15 // pred_region
        %p139 = scmp.lt.s32.totalorder %s28, 1
        %s140 = scalar_select %p139, %s28, 1
        %p141 = scmp.lt.s32.totalorder %s29, 0
        %s142 = scalar_select %p141, %s29, 0
        %s143 = smul.addr %s140, 6
        %s144 = sadd.s32 %s142, %s143
        %s145 = smul.addr %s144, 8
        %s146 = scalar_lea.vmem %s2, %s145
      $region20: #{fdq_norm2_forward.1} parent=15 // pred_fallthru
        _
    $region16: #{fdq_norm2_forward.1} parent=5 // pred_fallthru
      _
    %p147 = scmp.le.s32.totalorder 1, %s21
    %p148 = scmp.lt.s32.totalorder %s21, 3
    %p149 = pnand %p147, %p148
    %p150 = pneg %p149
    // Predicated region
    $region21: #{fdq_norm2_forward.1} parent=5 // pred_check
      _
    $region22: #{fdq_norm2_forward.1} parent=5 // pred_check_branch
      %152 = sbr.rel (%p149) target = $region24
    $region23: #{fdq_norm2_forward.1} parent=5 // pred_region
      %s153 = ssub.s32 %s21, 1
      %p154 = scmp.lt.s32.totalorder %s30, 1
      %s155 = scalar_select %p154, %s30, 1
      %p156 = scmp.lt.s32.totalorder %s31, 0
      %s157 = scalar_select %p156, %s31, 0
      %s158 = smul.addr %s155, 6
      %s159 = sadd.s32 %s157, %s158
      %s160 = smul.addr %s159, 8
      %s161 = scalar_lea.vmem %s2, %s160
      %p162 = pneg %p61
      %p163 = pneg %p58
      %p164 = pneg %p89
      %p165 = pneg %p86
      %p166 = scmp.lt.s32.totalorder %s30, 1
      %s167 = scalar_select %p166, %s30, 1
      %p168 = scmp.lt.s32.totalorder %s31, 0
      %s169 = scalar_select %p168, %s31, 0
      %s170 = smul.addr %s167, 6
      %s171 = sadd.s32 %s169, %s170
      %s172 = smul.addr %s171, 8
      %s173 = scalar_lea.vmem %s3, %s172
      %p174 = pneg %p117
      %p175 = pneg %p114
      %p176 = scmp.lt.s32.totalorder %s30, 1
      %s177 = scalar_select %p176, %s30, 1
      %p178 = scmp.lt.s32.totalorder %s31, 0
      %s179 = scalar_select %p178, %s31, 0
      %s180 = sadd.s32 %s179, %s177
      %s181 = smul.addr %s180, 8
      %s182 = scalar_lea.vmem %s4, %s181
      %p183 = scmp.lt.s32.totalorder %s30, 1
      %s184 = scalar_select %p183, %s30, 1
      %p185 = scmp.lt.s32.totalorder %s31, 0
      %s186 = scalar_select %p185, %s31, 0
      %s187 = smul.addr %s184, 6
      %s188 = sadd.s32 %s186, %s187
      %s189 = smul.addr %s188, 8
      %s190 = scalar_lea.vmem %s2, %s189
      %p191 = scmp.lt.s32.totalorder %s30, 1
      %s192 = scalar_select %p191, %s30, 1
      %p193 = scmp.lt.s32.totalorder %s31, 0
      %s194 = scalar_select %p193, %s31, 0
      %s195 = smul.addr %s192, 6
      %s196 = sadd.s32 %s194, %s195
      %s197 = smul.addr %s196, 8
      %s198 = scalar_lea.vmem %s3, %s197
      %p199 = scmp.lt.s32.totalorder %s30, 1
      %s200 = scalar_select %p199, %s30, 1
      %p201 = scmp.lt.s32.totalorder %s31, 0
      %s202 = scalar_select %p201, %s31, 0
      %s203 = sadd.s32 %s202, %s200
      %s204 = smul.addr %s203, 8
      %s205 = scalar_lea.vmem %s4, %s204
      %s206 = sld [smem:[#allocation4]]
      %s207 = sld [smem:[#allocation4 + $0x80]]
      %s208 = sld [smem:[#allocation4 + $0x100]]
      %s209 = sld [smem:[#allocation4 + $0x180]]
      %s210 = sld [smem:[#allocation4 + $0x200]]
      %s211 = sld [smem:[#allocation4 + $0x280]]
      %s212 = sld [smem:[#allocation4 + $0x1]]
      %s213 = sld [smem:[#allocation4 + $0x81]]
      %s214 = sld [smem:[#allocation4 + $0x101]]
      %s215 = sld [smem:[#allocation4 + $0x181]]
      %s216 = sld [smem:[#allocation4 + $0x201]]
      %s217 = sld [smem:[#allocation4 + $0x281]]
      %s218 = sld [smem:[#allocation4 + $0x2]]
      %s219 = sld [smem:[#allocation4 + $0x82]]
      %s220 = sld [smem:[#allocation4 + $0x102]]
      %s221 = sld [smem:[#allocation4 + $0x182]]
      %s222 = sld [smem:[#allocation4 + $0x202]]
      %s223 = sld [smem:[#allocation4 + $0x282]]
      %s224 = sld [smem:[#allocation4 + $0x3]]
      %s225 = sld [smem:[#allocation4 + $0x83]]
      %s226 = sld [smem:[#allocation4 + $0x103]]
      %s227 = sld [smem:[#allocation4 + $0x183]]
      %s228 = sld [smem:[#allocation4 + $0x203]]
      %s229 = sld [smem:[#allocation4 + $0x283]]
      %s230 = sld [smem:[#allocation4 + $0x4]]
      %s231 = sld [smem:[#allocation4 + $0x84]]
      %s232 = sld [smem:[#allocation4 + $0x104]]
      %s233 = sld [smem:[#allocation4 + $0x184]]
      %s234 = sld [smem:[#allocation4 + $0x204]]
      %s235 = sld [smem:[#allocation4 + $0x284]]
      %v236 = vld [vmem:[%s190] sm:$0xff]
      %s237 = sadd.s32 0, 8
      %s238 = scalar_lea.vmem %s190, %s237
      %v239 = vld [vmem:[%s238] sm:$0xff]
      %s240 = sadd.s32 0, 16
      %s241 = scalar_lea.vmem %s190, %s240
      %v242 = vld [vmem:[%s241] sm:$0xff]
      %s243 = sadd.s32 0, 24
      %s244 = scalar_lea.vmem %s190, %s243
      %v245 = vld [vmem:[%s244] sm:$0xff]
      %s246 = sadd.s32 0, 32
      %s247 = scalar_lea.vmem %s190, %s246
      %v248 = vld [vmem:[%s247] sm:$0xff]
      %s249 = sadd.s32 0, 40
      %s250 = scalar_lea.vmem %s190, %s249
      %v251 = vld [vmem:[%s250] sm:$0xff]
      %v252 = vmul.f32 %v236, %v236
      %v253 = vmul.f32 %v239, %v239
      %v254 = vadd.f32 %v252, %v253
      %v255 = vmul.f32 %v242, %v242
      %v256 = vadd.f32 %v254, %v255
      %v257 = vmul.f32 %v245, %v245
      %v258 = vadd.f32 %v256, %v257
      %v259 = vmul.f32 %v248, %v248
      %v260 = vadd.f32 %v258, %v259
      %v261 = vmul.f32 %v251, %v251
      %v262 = vadd.f32 %v260, %v261
      %v263 = vmax.f32 %v262, 1e-24
      %v264 = vrsqrt.pop %v263
      %v265 = vmul.f32 %v236, %v264
      %v266 = vstv %s206
      %v267 = vmul.f32 %v265, %v266
      %v268 = vstv %s212
      %v269 = vadd.f32 %v267, %v268
      %v270 = vceil.f32 %v269
      %v271 = vmax.f32 %v270, 0.0
      %v272 = vmin.f32 %v271, 7.0
      %v273 = vstv %s218
      %v274 = vmul.f32 %v272, %v273
      %v275 = vstv %s224
      %v276 = vadd.f32 %v274, %v275
      %v277 = vmul.f32 %v276, %v276
      %v278 = vmul.f32 %v239, %v264
      %v279 = vstv %s207
      %v280 = vmul.f32 %v278, %v279
      %v281 = vstv %s213
      %v282 = vadd.f32 %v280, %v281
      %v283 = vceil.f32 %v282
      %v284 = vmax.f32 %v283, 0.0
      %v285 = vmin.f32 %v284, 7.0
      %v286 = vstv %s219
      %v287 = vmul.f32 %v285, %v286
      %v288 = vstv %s225
      %v289 = vadd.f32 %v287, %v288
      %v290 = vmul.f32 %v289, %v289
      %v291 = vadd.f32 %v277, %v290
      %v292 = vmul.f32 %v242, %v264
      %v293 = vstv %s208
      %v294 = vmul.f32 %v292, %v293
      %v295 = vstv %s214
      %v296 = vadd.f32 %v294, %v295
      %v297 = vceil.f32 %v296
      %v298 = vmax.f32 %v297, 0.0
      %v299 = vmin.f32 %v298, 7.0
      %v300 = vstv %s220
      %v301 = vmul.f32 %v299, %v300
      %v302 = vstv %s226
      %v303 = vadd.f32 %v301, %v302
      %v304 = vmul.f32 %v303, %v303
      %v305 = vadd.f32 %v291, %v304
      %v306 = vmul.f32 %v245, %v264
      %v307 = vstv %s209
      %v308 = vmul.f32 %v306, %v307
      %v309 = vstv %s215
      %v310 = vadd.f32 %v308, %v309
      %v311 = vceil.f32 %v310
      %v312 = vmax.f32 %v311, 0.0
      %v313 = vmin.f32 %v312, 4.0
      %v314 = vstv %s221
      %v315 = vmul.f32 %v313, %v314
      %v316 = vstv %s227
      %v317 = vadd.f32 %v315, %v316
      %v318 = vmul.f32 %v317, %v317
      %v319 = vadd.f32 %v305, %v318
      %v320 = vmul.f32 %v248, %v264
      %v321 = vstv %s210
      %v322 = vmul.f32 %v320, %v321
      %v323 = vstv %s216
      %v324 = vadd.f32 %v322, %v323
      %v325 = vceil.f32 %v324
      %v326 = vmax.f32 %v325, 0.0
      %v327 = vmin.f32 %v326, 4.0
      %v328 = vstv %s222
      %v329 = vmul.f32 %v327, %v328
      %v330 = vstv %s228
      %v331 = vadd.f32 %v329, %v330
      %v332 = vmul.f32 %v331, %v331
      %v333 = vadd.f32 %v319, %v332
      %v334 = vmul.f32 %v251, %v264
      %v335 = vstv %s211
      %v336 = vmul.f32 %v334, %v335
      %v337 = vstv %s217
      %v338 = vadd.f32 %v336, %v337
      %v339 = vceil.f32 %v338
      %v340 = vmax.f32 %v339, 0.0
      %v341 = vmin.f32 %v340, 4.0
      %v342 = vstv %s223
      %v343 = vmul.f32 %v341, %v342
      %v344 = vstv %s229
      %v345 = vadd.f32 %v343, %v344
      %v346 = vmul.f32 %v345, %v345
      %v347 = vadd.f32 %v333, %v346
      %v348 = vmax.f32 %v347, 1e-24
      %v349 = vrsqrt.pop %v348
      %v350 = vmul.f32 %v276, %v349
      %351 = vst [vmem:[%s198] sm:$0xff] %v350
      %v352 = vmul.f32 %v350, %v266
      %v353 = vadd.f32 %v352, %v268
      %v354 = vceil.f32 %v353
      %v355 = vmax.f32 %v354, 0.0
      %v356 = vmin.f32 %v355, 7.0
      %v357 = vstv %s230
      %v358 = vmul.f32 %v356, %v357
      %v359 = vmul.f32 %v289, %v349
      %s360 = scalar_lea.vmem %s198, %s237
      %361 = vst [vmem:[%s360] sm:$0xff] %v359
      %v362 = vmul.f32 %v359, %v279
      %v363 = vadd.f32 %v362, %v281
      %v364 = vceil.f32 %v363
      %v365 = vmax.f32 %v364, 0.0
      %v366 = vmin.f32 %v365, 7.0
      %v367 = vstv %s231
      %v368 = vmul.f32 %v366, %v367
      %v369 = vadd.f32 %v358, %v368
      %v370 = vmul.f32 %v303, %v349
      %s371 = scalar_lea.vmem %s198, %s240
      %372 = vst [vmem:[%s371] sm:$0xff] %v370
      %v373 = vmul.f32 %v370, %v293
      %v374 = vadd.f32 %v373, %v295
      %v375 = vceil.f32 %v374
      %v376 = vmax.f32 %v375, 0.0
      %v377 = vmin.f32 %v376, 7.0
      %v378 = vstv %s232
      %v379 = vmul.f32 %v377, %v378
      %v380 = vadd.f32 %v369, %v379
      %v381 = vmul.f32 %v317, %v349
      %s382 = scalar_lea.vmem %s198, %s243
      %383 = vst [vmem:[%s382] sm:$0xff] %v381
      %v384 = vmul.f32 %v381, %v307
      %v385 = vadd.f32 %v384, %v309
      %v386 = vceil.f32 %v385
      %v387 = vmax.f32 %v386, 0.0
      %v388 = vmin.f32 %v387, 4.0
      %v389 = vstv %s233
      %v390 = vmul.f32 %v388, %v389
      %v391 = vadd.f32 %v380, %v390
      %v392 = vmul.f32 %v331, %v349
      %s393 = scalar_lea.vmem %s198, %s246
      %394 = vst [vmem:[%s393] sm:$0xff] %v392
      %v395 = vmul.f32 %v392, %v321
      %v396 = vadd.f32 %v395, %v323
      %v397 = vceil.f32 %v396
      %v398 = vmax.f32 %v397, 0.0
      %v399 = vmin.f32 %v398, 4.0
      %v400 = vstv %s234
      %v401 = vmul.f32 %v399, %v400
      %v402 = vadd.f32 %v391, %v401
      %v403 = vmul.f32 %v345, %v349
      %s404 = scalar_lea.vmem %s198, %s249
      %405 = vst [vmem:[%s404] sm:$0xff] %v403
      %v406 = vmul.f32 %v403, %v335
      %v407 = vadd.f32 %v406, %v337
      %v408 = vceil.f32 %v407
      %v409 = vmax.f32 %v408, 0.0
      %v410 = vmin.f32 %v409, 4.0
      %v411 = vstv %s235
      %v412 = vmul.f32 %v410, %v411
      %v413 = vadd.f32 %v402, %v412
      %v414 = vcvt.f32.s32.to.zero.pseudo %v413
      %415 = vst [vmem:[%s205] sm:$0xff] %v414
      %p416 = scmp.lt.s32.totalorder %s30, 1
      %s417 = scalar_select %p416, %s30, 1
      %p418 = scmp.lt.s32.totalorder %s31, 0
      %s419 = scalar_select %p418, %s31, 0
      %s420 = smul.addr %s417, 6
      %s421 = sadd.s32 %s419, %s420
      %s422 = smul.addr %s421, 8
      %s423 = scalar_lea.vmem %s3, %s422
      %p424 = scmp.lt.s32.totalorder %s30, 1
      %s425 = scalar_select %p424, %s30, 1
      %p426 = scmp.lt.s32.totalorder %s31, 0
      %s427 = scalar_select %p426, %s31, 0
      %s428 = sadd.s32 %s427, %s425
      %s429 = smul.addr %s428, 8
      %s430 = scalar_lea.vmem %s4, %s429
      // Predicated region
      $region25: #{fdq_norm2_forward.1} parent=23 // pred_check
        %p431 = pneg %p86
      $region26: #{fdq_norm2_forward.1} parent=23 // pred_check_branch
        %433 = sbr.rel (%p431) target = $region28
      $region27: #{fdq_norm2_forward.1} parent=23 // pred_region
        _
      $region28: #{fdq_norm2_forward.1} parent=23 // pred_fallthru
        _
      // Predicated region
      $region29: #{fdq_norm2_forward.1} parent=23 // pred_check
        %p434 = pneg %p114
      $region30: #{fdq_norm2_forward.1} parent=23 // pred_check_branch
        %436 = sbr.rel (%p434) target = $region32
      $region31: #{fdq_norm2_forward.1} parent=23 // pred_region
        _
      $region32: #{fdq_norm2_forward.1} parent=23 // pred_fallthru
        _
    $region24: #{fdq_norm2_forward.1} parent=5 // pred_fallthru
      _
    %p437 = scmp.le.s32.totalorder 2, %s21
    // Predicated region
    $region33: #{fdq_norm2_forward.1} parent=5 // pred_check
      %p438 = pneg %p437
    $region34: #{fdq_norm2_forward.1} parent=5 // pred_check_branch
      %440 = sbr.rel (%p438) target = $region36
    $region35: #{fdq_norm2_forward.1} parent=5 // pred_region
      %s441 = ssub.s32 %s21, 2
      // Predicated region
      $region37: #{fdq_norm2_forward.1} parent=35 // pred_check
        %p442 = pneg %p92
      $region38: #{fdq_norm2_forward.1} parent=35 // pred_check_branch
        %444 = sbr.rel (%p442) target = $region40
      $region39: #{fdq_norm2_forward.1} parent=35 // pred_region
        %p445 = scmp.lt.s32.totalorder %s32, 1
        %s446 = scalar_select %p445, %s32, 1
        %p447 = scmp.lt.s32.totalorder %s33, 0
        %s448 = scalar_select %p447, %s33, 0
        %s449 = smul.addr %s446, 6
        %s450 = sadd.s32 %s448, %s449
        %s451 = smul.addr %s450, 8
        %s452 = scalar_lea.vmem %s3, %s451
      $region40: #{fdq_norm2_forward.1} parent=35 // pred_fallthru
        _
      // Predicated region
      $region41: #{fdq_norm2_forward.1} parent=35 // pred_check
        %p453 = pneg %p120
      $region42: #{fdq_norm2_forward.1} parent=35 // pred_check_branch
        %455 = sbr.rel (%p453) target = $region44
      $region43: #{fdq_norm2_forward.1} parent=35 // pred_region
        %p456 = scmp.lt.s32.totalorder %s32, 1
        %s457 = scalar_select %p456, %s32, 1
        %p458 = scmp.lt.s32.totalorder %s33, 0
        %s459 = scalar_select %p458, %s33, 0
        %s460 = sadd.s32 %s459, %s457
        %s461 = smul.addr %s460, 8
        %s462 = scalar_lea.vmem %s4, %s461
      $region44: #{fdq_norm2_forward.1} parent=35 // pred_fallthru
        _
    $region36: #{fdq_norm2_forward.1} parent=5 // pred_fallthru
      _
  $region6: #{fdq_norm2_forward.1} parent=0 // loop_footer
    %s25 = sadd.s32 1, %s21
  $region7: #{fdq_norm2_forward.1} parent=0 // loop_footer_branch
    %20 = sbr.rel target = $region3
  $region8: #{fdq_norm2_forward.1} parent=0 // loop_exit
    _

</llo_original>
